<compile_context>
chip_gen: v6e
topology: v6e:2x2x1
jax: 0.10.0
libtpu: 0.0.40
codegen_flags: <defaults>
</compile_context>

<pallas_src>
import jax
import jax.numpy as jnp
from jax.experimental import pallas as pl
from jax.experimental.pallas import tpu as pltpu


_MAX_TILE_B = 8192                       # soft cap on rows per grid step
_MIN_GRID_STEPS = 8                      # keep the parallel grid busy for v7x's 2 TCs
_FALLBACK_VMEM = 64 * 1024 * 1024        # v7x physical VMEM; conservative for all generations


def _round_up(x: int, m: int) -> int:
    return ((x + m - 1) // m) * m


def _sublane_multiple(dtype) -> int:
    # sub-32-bit dtypes pack along sublanes: 8 rows for f32, 16 for bf16/f16, 32 for 8-bit.
    return max(8, 32 // jnp.dtype(dtype).itemsize)


def _vmem_capacity_bytes() -> int:
    try:
        info = pltpu.get_tpu_info()
    except Exception:
        return _FALLBACK_VMEM
    for attr in ("vmem_capacity_bytes", "vmem_bytes", "vmem_capacity"):
        v = getattr(info, attr, None)
        if v:
            try:
                v = int(v)
            except (TypeError, ValueError):
                continue
            if v > 0:
                return v
    return _FALLBACK_VMEM


def _log_softmax_kernel(logits_ref, logp_ref):
    # logits_ref: (tile_b, n) tile in VMEM; class axis is the lane (last) axis.
    # Rows are independent, so garbage rows in a partial boundary block are harmless.
    x = logits_ref[...].astype(jnp.float32)
    m = jnp.max(x, axis=-1, keepdims=True)
    z = x - m
    e = jnp.exp(z)                                   # single EUP pass per element, reused below
    s = jnp.sum(e, axis=-1, keepdims=True)
    logp_ref[...] = (z - jnp.log(s)).astype(logp_ref.dtype)


def categorical_log_probs(logits: jax.Array) -> jax.Array:
    """Numerically-stable log-softmax over the last axis via a Pallas TPU kernel."""
    orig_shape = logits.shape
    n = int(orig_shape[-1])

    x = logits
    if not jnp.issubdtype(x.dtype, jnp.floating):
        x = x.astype(jnp.float32)
    dt = x.dtype
    itemsize = jnp.dtype(dt).itemsize
    out_itemsize = itemsize

    # flatten leading dims -> [b, n] (free metadata reshape for contiguous arrays)
    b = 1
    for d in orig_shape[:-1]:
        b *= int(d)
    x = x.reshape(b, n)

    # ---- generation-aware tile sizing -------------------------------------------------------
    vmem_cap = _vmem_capacity_bytes()
    budget = vmem_cap // 2                      # working set: ~half of physical VMEM
    vmem_limit = int(vmem_cap * 3 // 4)         # raised scoped limit, headroom for compiler scratch

    sub = _sublane_multiple(dt)
    # per row: double-buffered input + output tiles, plus ~3 f32 intermediates at full tile size.
    bytes_per_row = 2 * n * (itemsize + out_itemsize) + 3 * 4 * n
    cap_rows = max(sub, budget // bytes_per_row)
    if b >= _MIN_GRID_STEPS * sub:
        cap_rows = min(cap_rows, b // _MIN_GRID_STEPS)   # >= 8 grid steps when batch allows
    tile_b = min(_MAX_TILE_B, cap_rows, _round_up(b, sub))
    tile_b = max(sub, (tile_b // sub) * sub)

    grid = (pl.cdiv(b, tile_b),)                 # partial boundary block; no batch padding
    # last block dim = full array extent -> legal for any n; no HBM-side class padding.
    blk = pl.BlockSpec((tile_b, n), lambda i: (i, 0))

    cost = pl.CostEstimate(
        flops=4 * b * n,
        transcendentals=b * n + b,
        bytes_accessed=b * n * (itemsize + out_itemsize),
    )

    logp = pl.pallas_call(
        _log_softmax_kernel,
        out_shape=jax.ShapeDtypeStruct((b, n), dt),
        grid_spec=pltpu.PrefetchScalarGridSpec(
            num_scalar_prefetch=0,
            grid=grid,
            in_specs=[blk],
            out_specs=blk,
        ),
        compiler_params=pltpu.CompilerParams(
            dimension_semantics=("parallel",),
            vmem_limit_bytes=vmem_limit,
        ),
        cost_estimate=cost,
    )(x)

    return logp.reshape(orig_shape)


class Categorical:
    """Minimal stand-in for torch.distributions.Categorical built from normalized log-probs."""

    def __init__(self, log_probs: jax.Array):
        self._log_probs = log_probs

    @property
    def logits(self) -> jax.Array:
        return self._log_probs

    @property
    def log_probs(self) -> jax.Array:
        return self._log_probs

    @property
    def probs(self) -> jax.Array:
        # derived lazily (keeps the mem-bound kernel's HBM writes at one tensor); computed in f32
        # so row sums stay ~1 even for bf16 storage.
        return jnp.exp(self._log_probs.astype(jnp.float32))


class Distribution:
    """JAX/Pallas analogue of the abstract PyTorch Distribution module."""

    def __init__(self, n_output: int):
        self.n_output = n_output

    def __call__(self, logits: jax.Array):
        raise NotImplementedError


class CategoricalDistribution(Distribution):
    """Concrete subclass: forward(logits) -> Categorical over n_output classes."""

    def __call__(self, logits: jax.Array) -> Categorical:
        assert logits.shape[-1] == self.n_output
        return Categorical(categorical_log_probs(logits))


if __name__ == "__main__":
    key = jax.random.PRNGKey(0)
    batch, n_output = 16, 32  # small shapes consistent with the module's constructor arg
    logits = jax.random.normal(key, (batch, n_output), dtype=jnp.float32)

    dist = CategoricalDistribution(n_output)(logits)
    log_probs = jax.block_until_ready(dist.log_probs)
    probs = jax.block_until_ready(dist.probs)

    # sanity: matches jax.nn.log_softmax reference; probs rows sum to 1
    ref = jax.nn.log_softmax(logits.astype(jnp.float32), axis=-1)
    assert log_probs.shape == (batch, n_output)
    assert jnp.allclose(log_probs, ref, atol=1e-5), jnp.max(jnp.abs(log_probs - ref))
    assert jnp.allclose(jnp.sum(probs, axis=-1), 1.0, atol=1e-5)

    # exercise the bf16 / non-divisible-batch (partial boundary block) / multi-dim path
    logits3 = jax.random.normal(jax.random.PRNGKey(1), (3, 5, n_output), dtype=jnp.bfloat16)
    lp3 = jax.block_until_ready(CategoricalDistribution(n_output)(logits3).log_probs)
    assert lp3.shape == (3, 5, n_output) and lp3.dtype == jnp.bfloat16
    ref3 = jax.nn.log_softmax(logits3.astype(jnp.float32), axis=-1)
    assert jnp.allclose(lp3.astype(jnp.float32), ref3, atol=3e-2)

    print("KERNEL_OK")
</pallas_src>

<mosaic_0001>
module attributes {stable_mosaic.version = 11 : i64} {
  func.func @_log_softmax_kernel(%arg0: i32, %arg1: memref<16x32xf32, #tpu.memory_space<vmem>>, %arg2: memref<16x32xf32, #tpu.memory_space<vmem>>) attributes {dimension_semantics = [#tpu.dimension_semantics<parallel>], iteration_bounds = array<i64: 1>, scalar_prefetch = 0 : i64, scratch_operands = 0 : i64, tpu.core_type = #tpu.core_type<tc>, window_params = [{transform_indices = @transform_0, window_bounds = array<i64: 16, 32>}, {transform_indices = @transform_1, window_bounds = array<i64: 16, 32>}]} {
    %c0 = arith.constant 0 : index
    %c0_0 = arith.constant 0 : index
    %0 = vector.load %arg1[%c0, %c0_0] : memref<16x32xf32, #tpu.memory_space<vmem>>, vector<16x32xf32>
    %cst = arith.constant dense<0xFF800000> : vector<16xf32>
    %1 = vector.multi_reduction <maximumf>, %0, %cst [1] : vector<16x32xf32> to vector<16xf32>
    %2 = vector.shape_cast %1 : vector<16xf32> to vector<16x1xf32>
    %3 = vector.broadcast %2 : vector<16x1xf32> to vector<16x32xf32>
    %4 = arith.subf %0, %3 : vector<16x32xf32>
    %5 = math.exp %4 : vector<16x32xf32>
    %cst_1 = arith.constant dense<0.000000e+00> : vector<16xf32>
    %6 = vector.multi_reduction <add>, %5, %cst_1 [1] : vector<16x32xf32> to vector<16xf32>
    %7 = vector.shape_cast %6 : vector<16xf32> to vector<16x1xf32>
    %8 = math.log %7 : vector<16x1xf32>
    %9 = vector.broadcast %8 : vector<16x1xf32> to vector<16x32xf32>
    %10 = arith.subf %4, %9 : vector<16x32xf32>
    %c0_2 = arith.constant 0 : index
    %c0_3 = arith.constant 0 : index
    %11 = vector.load %arg2[%c0_2, %c0_3] : memref<16x32xf32, #tpu.memory_space<vmem>>, vector<16x32xf32>
    tpu.vector_store %arg2[%c0_2, %c0_3], %10 {strides = array<i32>} : memref<16x32xf32, #tpu.memory_space<vmem>>, vector<16x32xf32>,
    return
  }
  func.func @transform_0(%arg0: i32) -> (i32, i32) {
    %c0_i32 = arith.constant 0 : i32
    %c0_i32_0 = arith.constant 0 : i32
    return %arg0, %c0_i32 : i32, i32
  }
  func.func @transform_1(%arg0: i32) -> (i32, i32) {
    %c0_i32 = arith.constant 0 : i32
    %c0_i32_0 = arith.constant 0 : i32
    return %arg0, %c0_i32 : i32, i32
  }
}

</mosaic_0001>

<llo_original>
// kernel: tpu_custom_call.1
$region0: #{tpu_custom_call.1}
  #allocation0 [shape = 'u32[]', space=smem, size = 0x4, offset = 0x4, fixed_abs, tag = 'smem constant byte address 0x4 - core index']
  #allocation1 [shape = 'u32[144,128]{1,0:T(1,128)}', space=vmem, size = 0x12000, scoped, tag = 'internal scratch']
  %s0 = inlined_call_operand.hbm [shape: f32[16,32], index: 0, kind: input, shape index: {}]
  %s1 = inlined_call_operand.hbm [shape: f32[16,32], index: 1, kind: output, shape index: {}]
  %s2 = sld [smem:[#allocation0]]
  $region18: #{tpu_custom_call.1} parent=0
    _
  %s4 = ssub.s32 1, %s2
  %s5 = scalar_select 0, %s4, %s2
  $region1: #{tpu_custom_call.1} parent=0
    #allocation2 [shape = 'u8[8192]{0}', space=vmem, size = 0x2000, scoped, tag = 'input window, operand 0, single buffered']
    #allocation3 [shape = 's32[1]{0}', space=sflag, size = 0x4, scoped, tag = 'scoped memory for tpu_custom_call.1']
    #allocation4 [shape = 's32[1]{0}', space=sflag, size = 0x4, scoped, tag = 'scoped memory for tpu_custom_call.1']
    #allocation5 [shape = 'u8[8192]{0}', space=vmem, size = 0x2000, scoped, tag = 'output window, operand 0, single buffered']
    %6 = vsyncpa [#allocation3], 0
    %7 = vsyncpa [#allocation4], 0
    // Predicated region
    $region2: #{tpu_custom_call.1} parent=1 // pred_check
      _
    $region3: #{tpu_custom_call.1} parent=1 // pred_check_branch
      %9 = sbr.rel (0) target = $region5
    $region4: #{tpu_custom_call.1} parent=1 // pred_region
      %s11 = ssub.s32 256, 256
      %12 = vsyncadd [#allocation3], %s11
      %s13 = sshll.u32 [#allocation2], 4
      %s14 = int_to_ptr.vmem [resolvable:$true] %s13
      %19 = dma.hbm_to_vmem [thread:$0]  %s0, 256, %s14, [#allocation3], 128, 128, 8
    $region5: #{tpu_custom_call.1} parent=1 // pred_fallthru
      _
    // Predicated region
    $region6: #{tpu_custom_call.1} parent=1 // pred_check
      _
    $region7: #{tpu_custom_call.1} parent=1 // pred_check_branch
      %21 = sbr.rel (0) target = $region9
    $region8: #{tpu_custom_call.1} parent=1 // pred_region
      %22 = dma.done [#allocation3], 256
    $region9: #{tpu_custom_call.1} parent=1 // pred_fallthru
      _
    %v23 = vld [vmem:[#allocation2] sm:$0xff]
    %v24 = vld [vmem:[#allocation2 + $0x8] sm:$0xff]
    %vm25 = vcmask 261120
    %v26 = vsel %vm25, %v23, -inf
    %27 = vmax.xlane.f32.xlu0 %v26
    %v28 = vpop.xlane.xlu0 %27
    %v29 = vsel %vm25, %v24, -inf
    %30 = vmax.xlane.f32.xlu0 %v29
    %v31 = vpop.xlane.xlu0 %30
    %v32 = vsub.f32 %v23, %v28
    %v33 = vsub.f32 %v24, %v31
    %v34 = vmul.f32 %v32, 1.442695
    %v35 = vpow.pop %v34
    %v36 = vmul.f32 %v33, 1.442695
    %v37 = vpow.pop %v36
    %v38 = vsel %vm25, %v35, 0.0
    %39 = vadd.xlane.f32.xlu0 %v38
    %v40 = vpop.xlane.xlu0 %39
    %v41 = vsel %vm25, %v37, 0.0
    %42 = vadd.xlane.f32.xlu0 %v41
    %v43 = vpop.xlane.xlu0 %42
    %v44 = vlog2.pop %v40
    %v45 = vmul.f32 %v44, 0.6931472
    %v46 = vlog2.pop %v43
    %v47 = vmul.f32 %v46, 0.6931472
    %v48 = vsub.f32 %v32, %v45
    %v49 = vsub.f32 %v33, %v47
    %50 = vst.msk [vmem:[#allocation5] sm:$0xff] %vm25, %v48
    %51 = vst.msk [vmem:[#allocation5 + $0x8] sm:$0xff] %vm25, %v49
    // Predicated region
    $region10: #{tpu_custom_call.1} parent=1 // pred_check
      _
    $region11: #{tpu_custom_call.1} parent=1 // pred_check_branch
      %53 = sbr.rel (0) target = $region13
    $region12: #{tpu_custom_call.1} parent=1 // pred_region
      %s55 = ssub.s32 256, 256
      %56 = vsyncadd [#allocation4], %s55
      %s57 = sshll.u32 [#allocation5], 4
      %s58 = int_to_ptr.vmem [resolvable:$true] %s57
      %63 = dma.vmem_to_hbm [thread:$0]  %s58, 256, %s1, [#allocation4], 128, 128, 8
    $region13: #{tpu_custom_call.1} parent=1 // pred_fallthru
      _
    // Predicated region
    $region14: #{tpu_custom_call.1} parent=1 // pred_check
      _
    $region15: #{tpu_custom_call.1} parent=1 // pred_check_branch
      %65 = sbr.rel (0) target = $region17
    $region16: #{tpu_custom_call.1} parent=1 // pred_region
      %66 = dma.done [#allocation4], 256
    $region17: #{tpu_custom_call.1} parent=1 // pred_fallthru
      _
    %67 = vsyncpa [#allocation3], 1
    %68 = vsyncpa [#allocation4], 1

</llo_original>
